<compile_context>
chip_gen: v7x
topology: tpu7x:2x2x1
jax: 0.10.0
libtpu: 0.0.40
codegen_flags: <defaults>
</compile_context>

<pallas_src>
import functools

import jax
import jax.numpy as jnp
from jax.experimental import pallas as pl
from jax.experimental.pallas import tpu as pltpu


def _round_up(x, m):
    return (x + m - 1) // m * m


# ---------------------------------------------------------------------------
# Input projection:  gates_x = x @ W_x + (b_i + b_h)   (off the critical path)
# ---------------------------------------------------------------------------
def _input_proj_kernel(x_ref, wx_ref, b_ref, o_ref):
    acc = jnp.dot(x_ref[...], wx_ref[...], preferred_element_type=jnp.float32)
    o_ref[...] = (acc + b_ref[...]).astype(o_ref.dtype)


def _input_projection(x_2d, w_x, bias_row, out_dtype, *, tile_m=512, tile_n=1024):
    M, F = x_2d.shape
    G = w_x.shape[1]                       # G = 4 * Hp
    tm = M if M <= tile_m else tile_m
    tn = G if G <= tile_n else tile_n
    # TODO(synk): for very large F, add a K(=F) grid axis with an f32 VMEM
    # accumulator instead of keeping the full (F, tn) W_x slab resident.
    xbytes = jnp.dtype(x_2d.dtype).itemsize
    wbytes = jnp.dtype(w_x.dtype).itemsize
    obytes = jnp.dtype(out_dtype).itemsize
    need = 2 * (tm * F * xbytes + F * tn * wbytes + tm * tn * obytes) + tn * 4
    vmem_limit = int(min(need + (16 << 20), 128 << 20))
    return pl.pallas_call(
        _input_proj_kernel,
        grid=(pl.cdiv(M, tm), pl.cdiv(G, tn)),
        in_specs=[
            pl.BlockSpec((tm, F), lambda i, j: (i, 0)),
            pl.BlockSpec((F, tn), lambda i, j: (0, j)),
            pl.BlockSpec((1, tn), lambda i, j: (0, j)),
        ],
        out_specs=pl.BlockSpec((tm, tn), lambda i, j: (i, j)),
        out_shape=jax.ShapeDtypeStruct((M, G), out_dtype),
        compiler_params=pltpu.CompilerParams(
            dimension_semantics=("parallel", "parallel"),
            vmem_limit_bytes=vmem_limit),
    )(x_2d, w_x, bias_row)


# ---------------------------------------------------------------------------
# Recurrence: per grid step, run `time_block` LSTM steps with h/c carried in
# vregs; h/c persist across time-grid steps inside the VMEM-resident outputs.
# ---------------------------------------------------------------------------
def _sigmoid_via_tanh(x):
    # sigmoid(x) == 0.5*(1 + tanh(x/2)); keeps the per-step EUP path tanh-only.
    return 0.5 * (1.0 + jnp.tanh(0.5 * x))


def _lstm_recurrence_kernel(gx_ref, wh_ref, h_ref, c_ref, *,
                            time_block, hidden, seq_len, unroll):
    t = pl.program_id(1)

    @pl.when(t == 0)
    def _init():
        h_ref[...] = jnp.zeros_like(h_ref)
        c_ref[...] = jnp.zeros_like(c_ref)

    wh = wh_ref[...]                         # (Hp, 4Hp), resident in VMEM
    base = t * time_block
    mask_tail = (seq_len % time_block) != 0  # static: only mask when ragged

    def step(k, carry):
        h, c = carry
        # one fused (B,Hp)x(Hp,4Hp) matmul per step; x-side already folded in.
        gates = gx_ref[k].astype(jnp.float32) + jnp.dot(
            h.astype(wh.dtype), wh, preferred_element_type=jnp.float32)
        i_t = _sigmoid_via_tanh(gates[:, 0 * hidden:1 * hidden])
        f_t = _sigmoid_via_tanh(gates[:, 1 * hidden:2 * hidden])
        g_t = jnp.tanh(gates[:, 2 * hidden:3 * hidden])
        o_t = _sigmoid_via_tanh(gates[:, 3 * hidden:4 * hidden])
        c_new = f_t * c + i_t * g_t
        h_new = o_t * jnp.tanh(c_new)
        if mask_tail:
            valid = (base + k) < seq_len     # ragged tail of the last block
            h_new = jnp.where(valid, h_new, h)
            c_new = jnp.where(valid, c_new, c)
        return h_new, c_new

    h_fin, c_fin = jax.lax.fori_loop(
        0, time_block, step, (h_ref[...], c_ref[...]), unroll=unroll)
    h_ref[...] = h_fin
    c_ref[...] = c_fin


def lstm_forward(x, params, *, time_block=8, batch_blocks=1,
                 weight_dtype=jnp.bfloat16, gates_dtype=jnp.float32,
                 unroll=True):
    """x: (batch, seq, feature) f32. Returns (h_T, c_T), each (batch, hidden) f32.

    weight_dtype:  dtype of W_x / W_h (bf16 recommended on v5e/v6e/v7x; f32
        reproduces the PyTorch f32 module to fp rounding).
    gates_dtype:   storage dtype of the precomputed x-side gate pre-activations
        (f32 keeps accuracy; bf16 halves the dominant HBM stream on v5e).
    batch_blocks:  set to 2 on v7x ONLY when the per-core batch block is >=128
        rows; keep 1 on v5e/v6e (single TensorCore -> splitting is pure overhead).
    unroll:        fori_loop unroll of the time block; use a small int (2-4) if
        the bundle dump shows vreg spills at large hidden sizes.
    """
    B, S, F = x.shape
    H = params["wii"].shape[1]
    assert S >= 1, "sequence length must be >= 1"

    Hp = _round_up(H, 128)                  # lane-aligned hidden / gate slices
    G = 4 * Hp
    Bp = _round_up(B, 8 * batch_blocks)     # sublane-aligned per-core batch
    b_blk = Bp // batch_blocks

    t_blk = min(time_block, S)
    nt = pl.cdiv(S, t_blk)

    # --- fuse + pad the 4 gates into (F,4Hp)/(Hp,4Hp); pre-sum the biases -----
    pad_wx = lambda w: jnp.pad(w, ((0, 0), (0, Hp - H)))
    pad_wh = lambda w: jnp.pad(w, ((0, Hp - H), (0, Hp - H)))
    pad_b = lambda b: jnp.pad(b, (0, Hp - H))

    w_x = jnp.concatenate([pad_wx(params["wii"]), pad_wx(params["wif"]),
                           pad_wx(params["wig"]), pad_wx(params["wio"])], axis=1)
    w_h = jnp.concatenate([pad_wh(params["whi"]), pad_wh(params["whf"]),
                           pad_wh(params["whg"]), pad_wh(params["who"])], axis=1)
    bias = jnp.concatenate([pad_b(params["bii"] + params["bhi"]),
                            pad_b(params["bif"] + params["bhf"]),
                            pad_b(params["big"] + params["bhg"]),
                            pad_b(params["bio"] + params["bho"])]
                           ).reshape(1, G).astype(jnp.float32)
    w_x = w_x.astype(weight_dtype)
    w_h = w_h.astype(weight_dtype)

    # --- hoist the input projection off the serial critical path -------------
    # Layout note: gates_x is produced as (S, Bp, 4Hp) so the serial kernel
    # indexes gx_ref[k] along the leading (non-tiled) axis with zero relayout
    # per step.  The transpose below only touches the small x array (F << 4Hp);
    # the big gates_x array is never transposed on host or in-kernel.
    x_p = jnp.pad(x, ((0, Bp - B), (0, 0), (0, 0)))
    x_sbf = jnp.transpose(x_p, (1, 0, 2)).astype(weight_dtype)      # (S, Bp, F)
    gates_x = _input_projection(x_sbf.reshape(S * Bp, F), w_x, bias, gates_dtype)
    gates_x = gates_x.reshape(S, Bp, G)
    # Perf note (v5e): for HBM-bound configs, the gates_x round trip can be
    # removed entirely by fusing x@W_x into the recurrence kernel on MXU slack;
    # neutral on v6e/v7x, so not done here.

    kernel = functools.partial(_lstm_recurrence_kernel, time_block=t_blk,
                               hidden=Hp, seq_len=S, unroll=unroll)

    # --- explicit VMEM budget for the recurrence ------------------------------
    gbytes = jnp.dtype(gates_dtype).itemsize
    wbytes = jnp.dtype(weight_dtype).itemsize
    need = (2 * t_blk * b_blk * G * gbytes      # double-buffered gates_x block
            + 2 * Hp * G * wbytes               # W_h (<= 2 buffers)
            + 4 * b_blk * Hp * 4)               # h/c output blocks
    vmem_limit = int(min(need + (16 << 20), 128 << 20))

    def call_recurrence(wh_pipeline_mode):
        wh_kw = {} if wh_pipeline_mode is None else dict(
            pipeline_mode=wh_pipeline_mode)
        return pl.pallas_call(
            kernel,
            # Time axis is innermost & sequential ("arbitrary"): it carries the
            # h/c state via the constant-index output blocks + pl.when(t==0)
            # re-init per batch block.  Do NOT reorder or mark it "parallel".
            grid=(batch_blocks, nt),
            in_specs=[
                pl.BlockSpec((t_blk, b_blk, G), lambda b, t: (t, b, 0)),
                pl.BlockSpec((Hp, G), lambda b, t: (0, 0), **wh_kw),
            ],
            out_specs=[
                pl.BlockSpec((b_blk, Hp), lambda b, t: (b, 0)),
                pl.BlockSpec((b_blk, Hp), lambda b, t: (b, 0)),
            ],
            out_shape=[jax.ShapeDtypeStruct((Bp, Hp), jnp.float32),
                       jax.ShapeDtypeStruct((Bp, Hp), jnp.float32)],
            compiler_params=pltpu.CompilerParams(
                dimension_semantics=("parallel", "arbitrary"),
                vmem_limit_bytes=vmem_limit),
        )(gates_x, w_h)

    # W_h has a constant index map -> never re-DMAed -> one buffer suffices.
    # Fall back to default double buffering if Buffered(1) is rejected.
    try:
        h_t, c_t = call_recurrence(pl.Buffered(1))
    except Exception:
        h_t, c_t = call_recurrence(None)

    return h_t[:B, :H], c_t[:B, :H]


def init_lstm_params(key, input_size, hidden_size):
    """Matches the PyTorch module's init_hidden: xavier_uniform for 2-D weights,
    zeros for 1-D biases."""
    def xavier(k, shape):
        fan_in, fan_out = shape
        bound = (6.0 / (fan_in + fan_out)) ** 0.5
        return jax.random.uniform(k, shape, jnp.float32, -bound, bound)

    names_2d = ["wii", "whi", "wif", "whf", "wig", "whg", "wio", "who"]
    keys = jax.random.split(key, len(names_2d))
    params = {}
    for name, k in zip(names_2d, keys):
        shape = ((input_size, hidden_size) if name.startswith("wi")
                 else (hidden_size, hidden_size))
        params[name] = xavier(k, shape)
    for name in ["bii", "bhi", "bif", "bhf", "big", "bhg", "bio", "bho"]:
        params[name] = jnp.zeros((hidden_size,), jnp.float32)
    return params


def lstm_reference(x, params):
    """Pure-JAX reference (mirrors the PyTorch forward loop)."""
    B, S, F = x.shape
    H = params["wii"].shape[1]
    h = jnp.zeros((B, H), jnp.float32)
    c = jnp.zeros((B, H), jnp.float32)

    def step(carry, x_t):
        h, c = carry
        i_t = jax.nn.sigmoid(x_t @ params["wii"] + params["bii"] + h @ params["whi"] + params["bhi"])
        f_t = jax.nn.sigmoid(x_t @ params["wif"] + params["bif"] + h @ params["whf"] + params["bhf"])
        g_t = jnp.tanh(x_t @ params["wig"] + params["big"] + h @ params["whg"] + params["bhg"])
        o_t = jax.nn.sigmoid(x_t @ params["wio"] + params["bio"] + h @ params["who"] + params["bho"])
        c_new = f_t * c + i_t * g_t
        h_new = o_t * jnp.tanh(c_new)
        return (h_new, c_new), None

    (h, c), _ = jax.lax.scan(step, (h, c), jnp.transpose(x, (1, 0, 2)))
    return h, c


if __name__ == "__main__":
    batch, seq, input_size, hidden_size = 2, 8, 4, 32

    key = jax.random.PRNGKey(0)
    k_params, k_x = jax.random.split(key)
    params = init_lstm_params(k_params, input_size, hidden_size)
    x = jax.random.normal(k_x, (batch, seq, input_size), jnp.float32)
    h_ref, c_ref = lstm_reference(x, params)

    # 1) exact f32 path (matches the PyTorch f32 module); time_block=4 gives
    #    two sequential time-grid steps, exercising the h/c carry.
    h_t, c_t = jax.block_until_ready(
        lstm_forward(x, params, time_block=4,
                     weight_dtype=jnp.float32, gates_dtype=jnp.float32))
    assert h_t.shape == (batch, hidden_size) and c_t.shape == (batch, hidden_size)
    assert jnp.allclose(h_t, h_ref, atol=1e-5, rtol=1e-5)
    assert jnp.allclose(c_t, c_ref, atol=1e-5, rtol=1e-5)

    # 2) ragged sequence length (S=7, time_block=4): exercises the masked tail
    #    instead of the old t_blk=1 divisor fallback.
    x7 = x[:, :7, :]
    h7_ref, c7_ref = lstm_reference(x7, params)
    h7, c7 = jax.block_until_ready(
        lstm_forward(x7, params, time_block=4,
                     weight_dtype=jnp.float32, gates_dtype=jnp.float32))
    assert jnp.allclose(h7, h7_ref, atol=1e-5, rtol=1e-5)
    assert jnp.allclose(c7, c7_ref, atol=1e-5, rtol=1e-5)

    # 3) recommended TPU dtype path: bf16 weights, f32 gate pre-activations.
    h_bf, c_bf = jax.block_until_ready(lstm_forward(x, params, time_block=8))
    assert jnp.allclose(h_bf, h_ref, atol=5e-2, rtol=5e-2)
    assert jnp.allclose(c_bf, c_ref, atol=5e-2, rtol=5e-2)

    print("KERNEL_OK")
</pallas_src>

<mosaic_0001>
module attributes {stable_mosaic.version = 11 : i64} {
  func.func @_input_proj_kernel(%arg0: i32, %arg1: i32, %arg2: memref<64x4xf32, #tpu.memory_space<vmem>>, %arg3: memref<4x512xf32, #tpu.memory_space<vmem>>, %arg4: memref<1x512xf32, #tpu.memory_space<vmem>>, %arg5: memref<64x512xf32, #tpu.memory_space<vmem>>) attributes {dimension_semantics = [#tpu.dimension_semantics<parallel>, #tpu.dimension_semantics<parallel>], iteration_bounds = array<i64: 1, 1>, scalar_prefetch = 0 : i64, scratch_operands = 0 : i64, tpu.core_type = #tpu.core_type<tc>, window_params = [{transform_indices = @transform_0, window_bounds = array<i64: 64, 4>}, {transform_indices = @transform_1, window_bounds = array<i64: 4, 512>}, {transform_indices = @transform_2, window_bounds = array<i64: 1, 512>}, {transform_indices = @transform_3, window_bounds = array<i64: 64, 512>}]} {
    %c0 = arith.constant 0 : index
    %c0_0 = arith.constant 0 : index
    %0 = vector.load %arg2[%c0, %c0_0] : memref<64x4xf32, #tpu.memory_space<vmem>>, vector<64x4xf32>
    %c0_1 = arith.constant 0 : index
    %c0_2 = arith.constant 0 : index
    %1 = vector.load %arg3[%c0_1, %c0_2] : memref<4x512xf32, #tpu.memory_space<vmem>>, vector<4x512xf32>
    %cst = arith.constant dense<0.000000e+00> : vector<64x512xf32>
    %2 = tpu.matmul %0, %1, %cst {dimension_numbers = #tpu.dot_dimension_numbers<[1], [0], [0], [1], [0, 0, 1, 1], [], []>} : vector<64x4xf32>, vector<4x512xf32>, vector<64x512xf32> -> vector<64x512xf32>
    %c0_3 = arith.constant 0 : index
    %c0_4 = arith.constant 0 : index
    %3 = vector.load %arg4[%c0_3, %c0_4] : memref<1x512xf32, #tpu.memory_space<vmem>>, vector<1x512xf32>
    %4 = vector.broadcast %3 : vector<1x512xf32> to vector<64x512xf32>
    %5 = arith.addf %2, %4 : vector<64x512xf32>
    %c0_5 = arith.constant 0 : index
    %c0_6 = arith.constant 0 : index
    %6 = vector.load %arg5[%c0_5, %c0_6] : memref<64x512xf32, #tpu.memory_space<vmem>>, vector<64x512xf32>
    tpu.vector_store %arg5[%c0_5, %c0_6], %5 {strides = array<i32>} : memref<64x512xf32, #tpu.memory_space<vmem>>, vector<64x512xf32>,
    return
  }
  func.func @transform_0(%arg0: i32, %arg1: i32) -> (i32, i32) {
    %c0_i32 = arith.constant 0 : i32
    %c0_i32_0 = arith.constant 0 : i32
    return %arg0, %c0_i32 : i32, i32
  }
  func.func @transform_1(%arg0: i32, %arg1: i32) -> (i32, i32) {
    %c0_i32 = arith.constant 0 : i32
    %c0_i32_0 = arith.constant 0 : i32
    return %c0_i32, %arg1 : i32, i32
  }
  func.func @transform_2(%arg0: i32, %arg1: i32) -> (i32, i32) {
    %c0_i32 = arith.constant 0 : i32
    %c0_i32_0 = arith.constant 0 : i32
    return %c0_i32, %arg1 : i32, i32
  }
  func.func @transform_3(%arg0: i32, %arg1: i32) -> (i32, i32) {
    %c0_i32 = arith.constant 0 : i32
    return %arg0, %arg1 : i32, i32
  }
}

</mosaic_0001>

<llo_original>
// kernel: tpu_custom_call.1
$region0: #{tpu_custom_call.1}
  #allocation0 [shape = 'u32[]', space=smem, size = 0x4, offset = 0x4, fixed_abs, tag = 'smem constant byte address 0x4 - core index']
  #allocation1 [shape = 'u32[144,128]{1,0:T(1,128)}', space=vmem, size = 0x12000, scoped, tag = 'internal scratch']
  %s0 = inlined_call_operand.vmem [shape: f32[64,4], index: 0, kind: input, shape index: {}]
  %s1 = inlined_call_operand.vmem [shape: f32[4,512], index: 1, kind: input, shape index: {}]
  %s2 = inlined_call_operand.vmem [shape: f32[1,512], index: 2, kind: input, shape index: {}]
  %s3 = inlined_call_operand.hbm [shape: f32[64,512], index: 3, kind: output, shape index: {}]
  %s4 = sld [smem:[#allocation0]]
  $region22: #{tpu_custom_call.1} parent=0
    _
  %s6 = ssub.s32 1, %s4
  %s7 = scalar_select 0, %s6, %s4
  $region1: #{tpu_custom_call.1} parent=0
    #allocation2 [shape = 'u8[131072]{0}', space=vmem, size = 0x20000, scoped, tag = 'output window, operand 0, single buffered']
    #allocation3 [shape = 's32[1]{0}', space=sflag, size = 0x4, scoped, tag = 'scoped memory for tpu_custom_call.1']
    %8 = vsyncpa [#allocation3], 0
    // Predicated region
    $region2: #{tpu_custom_call.1} parent=1 // pred_check
      _
    $region3: #{tpu_custom_call.1} parent=1 // pred_check_branch
      %10 = sbr.rel (0) target = $region5
    $region4: #{tpu_custom_call.1} parent=1 // pred_region
      _
    $region5: #{tpu_custom_call.1} parent=1 // pred_fallthru
      _
    // Predicated region
    $region6: #{tpu_custom_call.1} parent=1 // pred_check
      _
    $region7: #{tpu_custom_call.1} parent=1 // pred_check_branch
      %12 = sbr.rel (0) target = $region9
    $region8: #{tpu_custom_call.1} parent=1 // pred_region
      _
    $region9: #{tpu_custom_call.1} parent=1 // pred_fallthru
      _
    // Predicated region
    $region10: #{tpu_custom_call.1} parent=1 // pred_check
      _
    $region11: #{tpu_custom_call.1} parent=1 // pred_check_branch
      %14 = sbr.rel (0) target = $region13
    $region12: #{tpu_custom_call.1} parent=1 // pred_region
      _
    $region13: #{tpu_custom_call.1} parent=1 // pred_fallthru
      _
    %v15 = vld [vmem:[%s0] sm:$0xff]
    %v16 = vld [vmem:[%s0 + $0x8] sm:$0xff]
    %v17 = vld [vmem:[%s0 + $0x10] sm:$0xff]
    %v18 = vld [vmem:[%s0 + $0x18] sm:$0xff]
    %v19 = vld [vmem:[%s0 + $0x20] sm:$0xff]
    %v20 = vld [vmem:[%s0 + $0x28] sm:$0xff]
    %v21 = vld [vmem:[%s0 + $0x30] sm:$0xff]
    %v22 = vld [vmem:[%s0 + $0x38] sm:$0xff]
    %v23 = vld [vmem:[%s1] sm:$0xff]
    %v24 = vld [vmem:[%s1 + $0x8] sm:$0xff]
    %v25 = vld [vmem:[%s2] sm:$0xf]
    %v27 = vlaneseq
    %v28 = vshrl.u32 %v27, 7
    %v29 = vsub.s32 0, %v28
    %v30 = vrot.slane %v25, %v29
    %v31 = vlaneseq
    %v32 = vshrl.u32 %v31, 7
    %v33 = vsub.s32 1, %v32
    %v34 = vrot.slane %v25, %v33
    %v35 = vlaneseq
    %v36 = vshrl.u32 %v35, 7
    %v37 = vsub.s32 2, %v36
    %v38 = vrot.slane %v25, %v37
    %v39 = vlaneseq
    %v40 = vshrl.u32 %v39, 7
    %v41 = vsub.s32 3, %v40
    %v42 = vrot.slane %v25, %v41
    %v49 = vcombine.high %v23, %v23
    %v50 = vcombine.high %v24, %v24
    %vm51 = vcmask 31744
    %v53 = vsel %vm51, %v15, 0
    %v56 = vsel %vm51, %v16, 0
    %v59 = vsel %vm51, %v17, 0
    %v62 = vsel %vm51, %v18, 0
    %v65 = vsel %vm51, %v19, 0
    %v68 = vsel %vm51, %v20, 0
    %v71 = vsel %vm51, %v21, 0
    %v74 = vsel %vm51, %v22, 0
    %vm76 = vcmask 1043456
    %v77 = vsel %vm76, %v23, 0
    %v79 = vsel %vm76, %v49, 0
    %v81 = vsel %vm76, %v24, 0
    %v83 = vsel %vm76, %v50, 0
    %85 = vmatprep.subr.mxu0 %v79
    %86 = vmatpush1.msra.mxu0 %v77
    %87 = vmatprep.subr.mxu0 0.0
    %88 = vmatpush1.msra.mxu0 0.0
    %89 = vmatprep.subr.mxu0 0.0
    %90 = vmatpush1.msra.mxu0 0.0
    %91 = vmatprep.subr.mxu0 0.0
    %92 = vmatpush1.msra.mxu0 0.0
    %93 = vmatprep.subr.mxu0 0.0
    %94 = vmatpush1.msra.mxu0 0.0
    %95 = vmatprep.subr.mxu0 0.0
    %96 = vmatpush1.msra.mxu0 0.0
    %97 = vmatprep.subr.mxu0 0.0
    %98 = vmatpush1.msra.mxu0 0.0
    %99 = vmatprep.subr.mxu0 0.0
    %100 = vmatpush1.msra.mxu0 0.0
    %101 = vmatprep.subr.mxu0 0.0
    %102 = vmatpush1.msra.mxu0 0.0
    %103 = vmatprep.subr.mxu0 0.0
    %104 = vmatpush1.msra.mxu0 0.0
    %105 = vmatprep.subr.mxu0 0.0
    %106 = vmatpush1.msra.mxu0 0.0
    %107 = vmatprep.subr.mxu0 0.0
    %108 = vmatpush1.msra.mxu0 0.0
    %109 = vmatprep.subr.mxu0 0.0
    %110 = vmatpush1.msra.mxu0 0.0
    %111 = vmatprep.subr.mxu0 0.0
    %112 = vmatpush1.msra.mxu0 0.0
    %113 = vmatprep.subr.mxu0 0.0
    %114 = vmatpush1.msra.mxu0 0.0
    %115 = vmatprep.subr.mxu0 0.0
    %116 = vmatpush1.msra.mxu0 0.0
    %117 = vmatprep.subr.mxu0 0.0
    %118 = vmatpush1.msra.mxu0 0.0
    %119 = vmatprep.subr.mxu0 0.0
    %120 = vmatpush1.msra.mxu0 0.0
    %121 = vmatprep.subr.mxu0 0.0
    %122 = vmatpush1.msra.mxu0 0.0
    %123 = vmatprep.subr.mxu0 0.0
    %124 = vmatpush1.msra.mxu0 0.0
    %125 = vmatprep.subr.mxu0 0.0
    %126 = vmatpush1.msra.mxu0 0.0
    %127 = vmatprep.subr.mxu0 0.0
    %128 = vmatpush1.msra.mxu0 0.0
    %129 = vmatprep.subr.mxu0 0.0
    %130 = vmatpush1.msra.mxu0 0.0
    %131 = vmatprep.subr.mxu0 0.0
    %132 = vmatpush1.msra.mxu0 0.0
    %133 = vmatprep.subr.mxu0 0.0
    %134 = vmatpush1.msra.mxu0 0.0
    %135 = vmatprep.subr.mxu0 0.0
    %136 = vmatpush1.msra.mxu0 0.0
    %137 = vmatprep.subr.mxu0 0.0
    %138 = vmatpush1.msra.mxu0 0.0
    %139 = vmatprep.subr.mxu0 0.0
    %140 = vmatpush1.msra.mxu0 0.0
    %141 = vmatprep.subr.mxu0 0.0
    %142 = vmatpush1.msra.mxu0 0.0
    %143 = vmatprep.subr.mxu0 0.0
    %144 = vmatpush1.msra.mxu0 0.0
    %145 = vmatprep.subr.mxu0 0.0
    %146 = vmatpush1.msra.mxu0 0.0
    %147 = vmatprep.subr.mxu0 0.0
    %148 = vmatpush1.msra.mxu0 0.0
    %149 = vmatprep.mubr.f32.mxu0 0.0
    %150 = vmatmul.mubr.f32.gmra.mrb[0].mxu0 %v53
    %v151 = vpop.f32.mrb[0].mxu0
    %v152 = vadd.f32 %v30, %v151
    %v153 = vpop.f32.mrb[0].mxu0
    %v154 = vadd.f32 %v34, %v153
    %155 = vmatprep.mubr.f32.mxu0 0.0
    %156 = vmatmul.mubr.f32.gmra.mrb[0].mxu0 %v56
    %v157 = vpop.f32.mrb[0].mxu0
    %v158 = vadd.f32 %v30, %v157
    %v159 = vpop.f32.mrb[0].mxu0
    %v160 = vadd.f32 %v34, %v159
    %161 = vmatprep.mubr.f32.mxu0 0.0
    %162 = vmatmul.mubr.f32.gmra.mrb[0].mxu0 %v59
    %v163 = vpop.f32.mrb[0].mxu0
    %v164 = vadd.f32 %v30, %v163
    %v165 = vpop.f32.mrb[0].mxu0
    %v166 = vadd.f32 %v34, %v165
    %167 = vmatprep.mubr.f32.mxu0 0.0
    %168 = vmatmul.mubr.f32.gmra.mrb[0].mxu0 %v62
    %v169 = vpop.f32.mrb[0].mxu0
    %v170 = vadd.f32 %v30, %v169
    %v171 = vpop.f32.mrb[0].mxu0
    %v172 = vadd.f32 %v34, %v171
    %173 = vmatprep.mubr.f32.mxu0 0.0
    %174 = vmatmul.mubr.f32.gmra.mrb[0].mxu0 %v65
    %v175 = vpop.f32.mrb[0].mxu0
    %v176 = vadd.f32 %v30, %v175
    %v177 = vpop.f32.mrb[0].mxu0
    %v178 = vadd.f32 %v34, %v177
    %179 = vmatprep.mubr.f32.mxu0 0.0
    %180 = vmatmul.mubr.f32.gmra.mrb[0].mxu0 %v68
    %v181 = vpop.f32.mrb[0].mxu0
    %v182 = vadd.f32 %v30, %v181
    %v183 = vpop.f32.mrb[0].mxu0
    %v184 = vadd.f32 %v34, %v183
    %185 = vmatprep.mubr.f32.mxu0 0.0
    %186 = vmatmul.mubr.f32.gmra.mrb[0].mxu0 %v71
    %v187 = vpop.f32.mrb[0].mxu0
    %v188 = vadd.f32 %v30, %v187
    %v189 = vpop.f32.mrb[0].mxu0
    %v190 = vadd.f32 %v34, %v189
    %191 = vmatprep.mubr.f32.mxu0 0.0
    %192 = vmatmul.mubr.f32.gmra.mrb[0].mxu0 %v74
    %v193 = vpop.f32.mrb[0].mxu0
    %v194 = vadd.f32 %v30, %v193
    %v195 = vpop.f32.mrb[0].mxu0
    %v196 = vadd.f32 %v34, %v195
    %197 = vdwg.mxu0
    %198 = vmatprep.subr.mxu0 %v83
    %199 = vmatpush1.msra.mxu0 %v81
    %200 = vmatprep.subr.mxu0 0.0
    %201 = vmatpush1.msra.mxu0 0.0
    %202 = vmatprep.subr.mxu0 0.0
    %203 = vmatpush1.msra.mxu0 0.0
    %204 = vmatprep.subr.mxu0 0.0
    %205 = vmatpush1.msra.mxu0 0.0
    %206 = vmatprep.subr.mxu0 0.0
    %207 = vmatpush1.msra.mxu0 0.0
    %208 = vmatprep.subr.mxu0 0.0
    %209 = vmatpush1.msra.mxu0 0.0
    %210 = vmatprep.subr.mxu0 0.0
    %211 = vmatpush1.msra.mxu0 0.0
    %212 = vmatprep.subr.mxu0 0.0
    %213 = vmatpush1.msra.mxu0 0.0
    %214 = vmatprep.subr.mxu0 0.0
    %215 = vmatpush1.msra.mxu0 0.0
    %216 = vmatprep.subr.mxu0 0.0
    %217 = vmatpush1.msra.mxu0 0.0
    %218 = vmatprep.subr.mxu0 0.0
    %219 = vmatpush1.msra.mxu0 0.0
    %220 = vmatprep.subr.mxu0 0.0
    %221 = vmatpush1.msra.mxu0 0.0
    %222 = vmatprep.subr.mxu0 0.0
    %223 = vmatpush1.msra.mxu0 0.0
    %224 = vmatprep.subr.mxu0 0.0
    %225 = vmatpush1.msra.mxu0 0.0
    %226 = vmatprep.subr.mxu0 0.0
    %227 = vmatpush1.msra.mxu0 0.0
    %228 = vmatprep.subr.mxu0 0.0
    %229 = vmatpush1.msra.mxu0 0.0
    %230 = vmatprep.subr.mxu0 0.0
    %231 = vmatpush1.msra.mxu0 0.0
    %232 = vmatprep.subr.mxu0 0.0
    %233 = vmatpush1.msra.mxu0 0.0
    %234 = vmatprep.subr.mxu0 0.0
    %235 = vmatpush1.msra.mxu0 0.0
    %236 = vmatprep.subr.mxu0 0.0
    %237 = vmatpush1.msra.mxu0 0.0
    %238 = vmatprep.subr.mxu0 0.0
    %239 = vmatpush1.msra.mxu0 0.0
    %240 = vmatprep.subr.mxu0 0.0
    %241 = vmatpush1.msra.mxu0 0.0
    %242 = vmatprep.subr.mxu0 0.0
    %243 = vmatpush1.msra.mxu0 0.0
    %244 = vmatprep.subr.mxu0 0.0
    %245 = vmatpush1.msra.mxu0 0.0
    %246 = vmatprep.subr.mxu0 0.0
    %247 = vmatpush1.msra.mxu0 0.0
    %248 = vmatprep.subr.mxu0 0.0
    %249 = vmatpush1.msra.mxu0 0.0
    %250 = vmatprep.subr.mxu0 0.0
    %251 = vmatpush1.msra.mxu0 0.0
    %252 = vmatprep.subr.mxu0 0.0
    %253 = vmatpush1.msra.mxu0 0.0
    %254 = vmatprep.subr.mxu0 0.0
    %255 = vmatpush1.msra.mxu0 0.0
    %256 = vmatprep.subr.mxu0 0.0
    %257 = vmatpush1.msra.mxu0 0.0
    %258 = vmatprep.subr.mxu0 0.0
    %259 = vmatpush1.msra.mxu0 0.0
    %260 = vmatprep.subr.mxu0 0.0
    %261 = vmatpush1.msra.mxu0 0.0
    %262 = vmatprep.mubr.f32.mxu0 0.0
    %263 = vmatmul.mubr.f32.gmra.mrb[0].mxu0 %v53
    %v264 = vpop.f32.mrb[0].mxu0
    %v265 = vadd.f32 %v38, %v264
    %v266 = vpop.f32.mrb[0].mxu0
    %v267 = vadd.f32 %v42, %v266
    %268 = vmatprep.mubr.f32.mxu0 0.0
    %269 = vmatmul.mubr.f32.gmra.mrb[0].mxu0 %v56
    %v270 = vpop.f32.mrb[0].mxu0
    %v271 = vadd.f32 %v38, %v270
    %v272 = vpop.f32.mrb[0].mxu0
    %v273 = vadd.f32 %v42, %v272
    %274 = vmatprep.mubr.f32.mxu0 0.0
    %275 = vmatmul.mubr.f32.gmra.mrb[0].mxu0 %v59
    %v276 = vpop.f32.mrb[0].mxu0
    %v277 = vadd.f32 %v38, %v276
    %v278 = vpop.f32.mrb[0].mxu0
    %v279 = vadd.f32 %v42, %v278
    %280 = vmatprep.mubr.f32.mxu0 0.0
    %281 = vmatmul.mubr.f32.gmra.mrb[0].mxu0 %v62
    %v282 = vpop.f32.mrb[0].mxu0
    %v283 = vadd.f32 %v38, %v282
    %v284 = vpop.f32.mrb[0].mxu0
    %v285 = vadd.f32 %v42, %v284
    %286 = vmatprep.mubr.f32.mxu0 0.0
    %287 = vmatmul.mubr.f32.gmra.mrb[0].mxu0 %v65
    %v288 = vpop.f32.mrb[0].mxu0
    %v289 = vadd.f32 %v38, %v288
    %v290 = vpop.f32.mrb[0].mxu0
    %v291 = vadd.f32 %v42, %v290
    %292 = vmatprep.mubr.f32.mxu0 0.0
    %293 = vmatmul.mubr.f32.gmra.mrb[0].mxu0 %v68
    %v294 = vpop.f32.mrb[0].mxu0
    %v295 = vadd.f32 %v38, %v294
    %v296 = vpop.f32.mrb[0].mxu0
    %v297 = vadd.f32 %v42, %v296
    %298 = vmatprep.mubr.f32.mxu0 0.0
    %299 = vmatmul.mubr.f32.gmra.mrb[0].mxu0 %v71
    %v300 = vpop.f32.mrb[0].mxu0
    %v301 = vadd.f32 %v38, %v300
    %v302 = vpop.f32.mrb[0].mxu0
    %v303 = vadd.f32 %v42, %v302
    %304 = vmatprep.mubr.f32.mxu0 0.0
    %305 = vmatmul.mubr.f32.gmra.mrb[0].mxu0 %v74
    %v306 = vpop.f32.mrb[0].mxu0
    %v307 = vadd.f32 %v38, %v306
    %v308 = vpop.f32.mrb[0].mxu0
    %v309 = vadd.f32 %v42, %v308
    %310 = vdwg.mxu0
    %311 = vst [vmem:[#allocation2] sm:$0xff] %v152
    %312 = vst [vmem:[#allocation2 + $0x8] sm:$0xff] %v154
    %313 = vst [vmem:[#allocation2 + $0x10] sm:$0xff] %v265
    %314 = vst [vmem:[#allocation2 + $0x18] sm:$0xff] %v267
    %315 = vst [vmem:[#allocation2 + $0x20] sm:$0xff] %v158
    %316 = vst [vmem:[#allocation2 + $0x28] sm:$0xff] %v160
    %317 = vst [vmem:[#allocation2 + $0x30] sm:$0xff] %v271
    %318 = vst [vmem:[#allocation2 + $0x38] sm:$0xff] %v273
    %319 = vst [vmem:[#allocation2 + $0x40] sm:$0xff] %v164
    %320 = vst [vmem:[#allocation2 + $0x48] sm:$0xff] %v166
    %321 = vst [vmem:[#allocation2 + $0x50] sm:$0xff] %v277
    %322 = vst [vmem:[#allocation2 + $0x58] sm:$0xff] %v279
    %323 = vst [vmem:[#allocation2 + $0x60] sm:$0xff] %v170
    %324 = vst [vmem:[#allocation2 + $0x68] sm:$0xff] %v172
    %325 = vst [vmem:[#allocation2 + $0x70] sm:$0xff] %v283
    %326 = vst [vmem:[#allocation2 + $0x78] sm:$0xff] %v285
    %327 = vst [vmem:[#allocation2 + $0x80] sm:$0xff] %v176
    %328 = vst [vmem:[#allocation2 + $0x88] sm:$0xff] %v178
    %329 = vst [vmem:[#allocation2 + $0x90] sm:$0xff] %v289
    %330 = vst [vmem:[#allocation2 + $0x98] sm:$0xff] %v291
    %331 = vst [vmem:[#allocation2 + $0xa0] sm:$0xff] %v182
    %332 = vst [vmem:[#allocation2 + $0xa8] sm:$0xff] %v184
    %333 = vst [vmem:[#allocation2 + $0xb0] sm:$0xff] %v295
    %334 = vst [vmem:[#allocation2 + $0xb8] sm:$0xff] %v297
    %335 = vst [vmem:[#allocation2 + $0xc0] sm:$0xff] %v188
    %336 = vst [vmem:[#allocation2 + $0xc8] sm:$0xff] %v190
    %337 = vst [vmem:[#allocation2 + $0xd0] sm:$0xff] %v301
    %338 = vst [vmem:[#allocation2 + $0xd8] sm:$0xff] %v303
    %339 = vst [vmem:[#allocation2 + $0xe0] sm:$0xff] %v194
    %340 = vst [vmem:[#allocation2 + $0xe8] sm:$0xff] %v196
    %341 = vst [vmem:[#allocation2 + $0xf0] sm:$0xff] %v307
    %342 = vst [vmem:[#allocation2 + $0xf8] sm:$0xff] %v309
    // Predicated region
    $region14: #{tpu_custom_call.1} parent=1 // pred_check
      _
    $region15: #{tpu_custom_call.1} parent=1 // pred_check_branch
      %344 = sbr.rel (0) target = $region17
    $region16: #{tpu_custom_call.1} parent=1 // pred_region
      %s346 = ssub.s32 4096, 4096
      %347 = vsyncadd [#allocation3], %s346
      %s348 = sshll.u32 [#allocation2], 4
      %s349 = int_to_ptr.vmem [resolvable:$true] %s348
      %354 = dma.vmem_to_hbm [thread:$0]  %s349, 4096, %s3, [#allocation3], 512, 512, 32
    $region17: #{tpu_custom_call.1} parent=1 // pred_fallthru
      _
    // Predicated region
    $region18: #{tpu_custom_call.1} parent=1 // pred_check
      _
    $region19: #{tpu_custom_call.1} parent=1 // pred_check_branch
      %356 = sbr.rel (0) target = $region21
    $region20: #{tpu_custom_call.1} parent=1 // pred_region
      %357 = dma.done [#allocation3], 4096
    $region21: #{tpu_custom_call.1} parent=1 // pred_fallthru
      _
    %358 = vsyncpa [#allocation3], 1

</llo_original>
